<compile_context>
chip_gen: v7x
topology: tpu7x:2x2x1
jax: 0.10.0
libtpu: 0.0.40
codegen_flags: <defaults>
</compile_context>

<pallas_src>
import functools
import math

import numpy as np

import jax
import jax.numpy as jnp
from jax.experimental import pallas as pl
from jax.experimental.pallas import tpu as pltpu


def _round_up(x, m):
    return ((x + m - 1) // m) * m


def _xavier_uniform(key, out_features, in_features, dtype=jnp.float32):
    # Matches torch.nn.init.xavier_uniform_ for a (out, in) Linear weight.
    bound = math.sqrt(6.0 / (in_features + out_features))
    return jax.random.uniform(
        key, (out_features, in_features), dtype=dtype, minval=-bound, maxval=bound
    )


def init_params(key, state_size, action_size, hidden_size):
    """Raw PyTorch-layout params (used by the pure-JAX references)."""
    k1, k2, k3, k4 = jax.random.split(key, 4)
    return {
        "w_s": _xavier_uniform(k1, hidden_size, state_size),
        "b_s": jnp.zeros((hidden_size,), jnp.float32),
        "w_a": _xavier_uniform(k2, hidden_size, action_size),
        "b_a": jnp.zeros((hidden_size,), jnp.float32),
        "w_2": _xavier_uniform(k3, hidden_size, 2 * hidden_size),
        "b_2": jnp.zeros((hidden_size,), jnp.float32),
        "w_h": _xavier_uniform(k4, action_size, hidden_size),
        "b_h": jnp.zeros((action_size,), jnp.float32),
    }


def pack_params(params, state_size, action_size, hidden_size):
    """One-time packing of all weights/biases into a single padded bf16 slab.

    Slab layout (row-section starts are multiples of 16; exact zeros elsewhere):
      [r_w1 : r_w1+K_in)  fused W1^T: rows [0,S) = W_s^T in lanes [0,H),
                          rows [S,S+A) = W_a^T in lanes [H,2H)
      [r_w2 : r_w2+L1)    W_2^T (2H x H) in lanes [0,H)
      [r_wh : r_wh+L2)    W_h^T (H x A)  in lanes [0,A)
      [r_b  : r_b +16)    row 0: [b_s | b_a], row 1: b_2, row 2: b_h
    """
    S, A, H = state_size, action_size, hidden_size
    assert A <= 128, "head output lanes assumed to fit one 128-lane tile"

    K_in = _round_up(S + A, 16)      # fused [state | action] contraction dim
    L1 = _round_up(2 * H, 128)       # layer-1 output lanes ([s | a])
    L2 = _round_up(H, 128)           # layer-2 output lanes
    L3 = 128                         # head output lanes (lane-dense compute)
    L = max(L1, L2, L3)

    r_w1 = 0
    r_w2 = r_w1 + K_in               # multiple of 16
    r_wh = r_w2 + L1                 # multiple of 16
    r_b = r_wh + L2                  # multiple of 16
    R = r_b + 16

    slab = np.zeros((R, L), np.float32)
    w_s = np.asarray(params["w_s"], np.float32)   # (H, S)
    w_a = np.asarray(params["w_a"], np.float32)   # (H, A)
    w_2 = np.asarray(params["w_2"], np.float32)   # (H, 2H)
    w_h = np.asarray(params["w_h"], np.float32)   # (A, H)

    slab[r_w1:r_w1 + S, 0:H] = w_s.T                      # state rows -> lanes [0,H)
    slab[r_w1 + S:r_w1 + S + A, H:2 * H] = w_a.T          # action rows -> lanes [H,2H)
    slab[r_w2:r_w2 + 2 * H, 0:H] = w_2.T
    slab[r_wh:r_wh + H, 0:A] = w_h.T
    slab[r_b, 0:H] = np.asarray(params["b_s"])
    slab[r_b, H:2 * H] = np.asarray(params["b_a"])
    slab[r_b + 1, 0:H] = np.asarray(params["b_2"])
    slab[r_b + 2, 0:A] = np.asarray(params["b_h"])

    meta = dict(S=S, A=A, H=H, K_in=K_in, L1=L1, L2=L2, L3=L3, L=L,
                r_w1=r_w1, r_w2=r_w2, r_wh=r_wh, r_b=r_b, R=R)
    return jnp.asarray(slab, dtype=jnp.bfloat16), meta


def qnet_kernel(sa_ref, slab_ref, out_ref, *, meta):
    A = meta["A"]
    K_in, L1, L2, L3 = meta["K_in"], meta["L1"], meta["L2"], meta["L3"]
    r_w1, r_w2, r_wh, r_b = meta["r_w1"], meta["r_w2"], meta["r_wh"], meta["r_b"]

    sa = sa_ref[...]                                        # (TB, K_in) bf16

    # Biases: one aligned (16, L) load; bias-add / ReLU stay in f32 on the VPU.
    biases = slab_ref[r_b:r_b + 16, :].astype(jnp.float32)

    # ---- layer 1: fused dense_s / dense_a -> already-concatenated [s | a] ----
    w1 = slab_ref[r_w1:r_w1 + K_in, 0:L1]                   # (K_in, L1) bf16
    h1 = jnp.dot(sa, w1, preferred_element_type=jnp.float32)
    h1 = jnp.maximum(h1 + biases[0:1, 0:L1], 0.0)           # (TB, L1) f32, lanes [2H:) = 0

    # ---- layer 2: single matmul against zero-padded W2 ----
    w2 = slab_ref[r_w2:r_w2 + L1, 0:L2]                     # (L1, L2) bf16
    h2 = jnp.dot(h1.astype(jnp.bfloat16), w2, preferred_element_type=jnp.float32)
    h2 = jnp.maximum(h2 + biases[1:2, 0:L2], 0.0)           # (TB, L2) f32

    # ---- head (no activation) ----
    wh = slab_ref[r_wh:r_wh + L2, 0:L3]                     # (L2, L3) bf16
    q = jnp.dot(h2.astype(jnp.bfloat16), wh, preferred_element_type=jnp.float32)
    q = q + biases[2:3, 0:L3]                               # (TB, L3) f32

    # Compact store: only the A real output lanes go back to HBM.
    out_ref[...] = q[:, 0:A].astype(out_ref.dtype)


def qnet_forward(state, action, slab, meta):
    """QNet forward: state (B, S), action (B, A) -> (B, A) float32."""
    B = state.shape[0]
    S, A, H = meta["S"], meta["A"], meta["H"]
    K_in, L, R = meta["K_in"], meta["L"], meta["R"]

    # ---- batch tiling ----
    B8 = _round_up(B, 8)
    if B8 <= 256:
        num_blocks, TB = 1, B8
    else:
        # Even number of blocks so the "parallel" batch axis shards across both
        # v7x TensorCores; blocks of up to ~1024 rows amortize per-step overhead.
        num_blocks = 2 * pl.cdiv(B8, 2 * 1024)
        TB = _round_up(pl.cdiv(B8, num_blocks), 8)
    B_pad = num_blocks * TB

    # Single fused [state | action] input stream, lane-padded to K_in, bf16.
    sa = jnp.concatenate([state, action], axis=1)
    sa = jnp.pad(sa, ((0, B_pad - B), (0, K_in - (S + A))))
    sa = sa.astype(slab.dtype)

    flops = 2 * B_pad * ((S + A) * 2 * H + 2 * H * H + H * A)
    bytes_accessed = (sa.size * sa.dtype.itemsize
                      + slab.size * slab.dtype.itemsize
                      + B_pad * A * 4)

    kernel = functools.partial(qnet_kernel, meta=meta)
    out_padded = pl.pallas_call(
        kernel,
        out_shape=jax.ShapeDtypeStruct((B_pad, A), jnp.float32),
        grid=(num_blocks,),
        in_specs=[
            pl.BlockSpec((TB, K_in), lambda i: (i, 0)),
            pl.BlockSpec((R, L), lambda i: (0, 0)),   # weight slab stays VMEM-resident
        ],
        out_specs=pl.BlockSpec((TB, A), lambda i: (i, 0)),
        compiler_params=pltpu.CompilerParams(
            dimension_semantics=("parallel",),
        ),
        cost_estimate=pl.CostEstimate(
            flops=flops, transcendentals=0, bytes_accessed=bytes_accessed),
    )(sa, slab)

    return out_padded if B_pad == B else out_padded[:B]


def qnet_reference(state, action, params):
    """Pure-JAX f32 reference matching the PyTorch forward exactly."""
    s = jax.nn.relu(state @ params["w_s"].T + params["b_s"])
    a = jax.nn.relu(action @ params["w_a"].T + params["b_a"])
    x = jnp.concatenate([s, a], axis=1)
    x = jax.nn.relu(x @ params["w_2"].T + params["b_2"])
    return x @ params["w_h"].T + params["b_h"]


def qnet_reference_bf16(state, action, params):
    """Same math, mimicking the kernel numerics (bf16 MXU operands, f32 acc)."""
    bf, f32 = jnp.bfloat16, jnp.float32

    def dot(x, w):
        return jnp.dot(x.astype(bf), w.astype(bf), preferred_element_type=f32)

    def bias(name):
        return params[name].astype(bf).astype(f32)

    s = jax.nn.relu(dot(state, params["w_s"].T) + bias("b_s"))
    a = jax.nn.relu(dot(action, params["w_a"].T) + bias("b_a"))
    x = jnp.concatenate([s, a], axis=1)
    x = jax.nn.relu(dot(x, params["w_2"].T) + bias("b_2"))
    return dot(x, params["w_h"].T) + bias("b_h")


if __name__ == "__main__":
    state_size, action_size, hidden_size, batch = 8, 4, 32, 2

    key = jax.random.PRNGKey(0)
    kp, ks, ka = jax.random.split(key, 3)

    params = init_params(kp, state_size, action_size, hidden_size)
    slab, meta = pack_params(params, state_size, action_size, hidden_size)

    state = jax.random.normal(ks, (batch, state_size), dtype=jnp.float32)
    action = jax.random.normal(ka, (batch, action_size), dtype=jnp.float32)

    out = qnet_forward(state, action, slab, meta)
    out = jax.block_until_ready(out)
    assert out.shape == (batch, action_size)

    # Tight check against a reference using the same bf16 operand rounding.
    ref_bf16 = qnet_reference_bf16(state, action, params)
    assert jnp.allclose(out, ref_bf16, atol=2e-3, rtol=2e-3), \
        "mismatch vs bf16-emulating reference"

    # Loose sanity check against the exact f32 (PyTorch-equivalent) reference.
    ref_f32 = qnet_reference(state, action, params)
    assert jnp.allclose(out, ref_f32, atol=1e-1, rtol=1e-1), \
        "mismatch vs f32 reference"

    print("KERNEL_OK")
</pallas_src>

<mosaic_0001>
module attributes {stable_mosaic.version = 11 : i64} {
  func.func @qnet_kernel(%arg0: i32, %arg1: memref<8x16xbf16, #tpu.memory_space<vmem>>, %arg2: memref<288x128xbf16, #tpu.memory_space<vmem>>, %arg3: memref<8x4xf32, #tpu.memory_space<vmem>>) attributes {dimension_semantics = [#tpu.dimension_semantics<parallel>], iteration_bounds = array<i64: 1>, scalar_prefetch = 0 : i64, scratch_operands = 0 : i64, tpu.core_type = #tpu.core_type<tc>, window_params = [{transform_indices = @transform_0, window_bounds = array<i64: 8, 16>}, {pipeline_mode = #tpu.pipeline_mode<synchronous>, transform_indices = @transform_1, window_bounds = array<i64: 288, 128>}, {transform_indices = @transform_2, window_bounds = array<i64: 8, 4>}]} {
    %c0 = arith.constant 0 : index
    %c0_0 = arith.constant 0 : index
    %0 = vector.load %arg1[%c0, %c0_0] : memref<8x16xbf16, #tpu.memory_space<vmem>>, vector<8x16xbf16>
    %c272 = arith.constant 272 : index
    %c0_1 = arith.constant 0 : index
    %1 = vector.load %arg2[%c272, %c0_1] : memref<288x128xbf16, #tpu.memory_space<vmem>>, vector<16x128xbf16>
    %2 = arith.extf %1 : vector<16x128xbf16> to vector<16x128xf32>
    %c0_2 = arith.constant 0 : index
    %c0_3 = arith.constant 0 : index
    %3 = vector.load %arg2[%c0_2, %c0_3] : memref<288x128xbf16, #tpu.memory_space<vmem>>, vector<16x128xbf16>
    %cst = arith.constant dense<0.000000e+00> : vector<8x128xf32>
    %4 = tpu.matmul %0, %3, %cst {dimension_numbers = #tpu.dot_dimension_numbers<[1], [0], [0], [1], [0, 0, 1, 1], [], []>} : vector<8x16xbf16>, vector<16x128xbf16>, vector<8x128xf32> -> vector<8x128xf32>
    %5 = vector.extract_strided_slice %2 {offsets = [0, 0], sizes = [1, 128], strides = [1, 1]} : vector<16x128xf32> to vector<1x128xf32>
    %6 = vector.broadcast %5 : vector<1x128xf32> to vector<8x128xf32>
    %7 = arith.addf %4, %6 : vector<8x128xf32>
    %cst_4 = arith.constant 0.000000e+00 : f32
    %8 = vector.broadcast %cst_4 : f32 to vector<8x128xf32>
    %9 = arith.maximumf %7, %8 : vector<8x128xf32>
    %c16 = arith.constant 16 : index
    %c0_5 = arith.constant 0 : index
    %10 = vector.load %arg2[%c16, %c0_5] : memref<288x128xbf16, #tpu.memory_space<vmem>>, vector<128x128xbf16>
    %11 = arith.truncf %9 : vector<8x128xf32> to vector<8x128xbf16>
    %cst_6 = arith.constant dense<0.000000e+00> : vector<8x128xf32>
    %12 = tpu.matmul %11, %10, %cst_6 {dimension_numbers = #tpu.dot_dimension_numbers<[1], [0], [0], [1], [0, 0, 1, 1], [], []>} : vector<8x128xbf16>, vector<128x128xbf16>, vector<8x128xf32> -> vector<8x128xf32>
    %13 = vector.extract_strided_slice %2 {offsets = [1, 0], sizes = [1, 128], strides = [1, 1]} : vector<16x128xf32> to vector<1x128xf32>
    %14 = vector.broadcast %13 : vector<1x128xf32> to vector<8x128xf32>
    %15 = arith.addf %12, %14 : vector<8x128xf32>
    %cst_7 = arith.constant 0.000000e+00 : f32
    %16 = vector.broadcast %cst_7 : f32 to vector<8x128xf32>
    %17 = arith.maximumf %15, %16 : vector<8x128xf32>
    %c144 = arith.constant 144 : index
    %c0_8 = arith.constant 0 : index
    %18 = vector.load %arg2[%c144, %c0_8] : memref<288x128xbf16, #tpu.memory_space<vmem>>, vector<128x128xbf16>
    %19 = arith.truncf %17 : vector<8x128xf32> to vector<8x128xbf16>
    %cst_9 = arith.constant dense<0.000000e+00> : vector<8x128xf32>
    %20 = tpu.matmul %19, %18, %cst_9 {dimension_numbers = #tpu.dot_dimension_numbers<[1], [0], [0], [1], [0, 0, 1, 1], [], []>} : vector<8x128xbf16>, vector<128x128xbf16>, vector<8x128xf32> -> vector<8x128xf32>
    %21 = vector.extract_strided_slice %2 {offsets = [2, 0], sizes = [1, 128], strides = [1, 1]} : vector<16x128xf32> to vector<1x128xf32>
    %22 = vector.broadcast %21 : vector<1x128xf32> to vector<8x128xf32>
    %23 = arith.addf %20, %22 : vector<8x128xf32>
    %24 = vector.extract_strided_slice %23 {offsets = [0, 0], sizes = [8, 4], strides = [1, 1]} : vector<8x128xf32> to vector<8x4xf32>
    %c0_10 = arith.constant 0 : index
    %c0_11 = arith.constant 0 : index
    %25 = vector.load %arg3[%c0_10, %c0_11] : memref<8x4xf32, #tpu.memory_space<vmem>>, vector<8x4xf32>
    tpu.vector_store %arg3[%c0_10, %c0_11], %24 {strides = array<i32>} : memref<8x4xf32, #tpu.memory_space<vmem>>, vector<8x4xf32>,
    return
  }
  func.func @transform_0(%arg0: i32) -> (i32, i32) {
    %c0_i32 = arith.constant 0 : i32
    %c0_i32_0 = arith.constant 0 : i32
    return %arg0, %c0_i32 : i32, i32
  }
  func.func @transform_1(%arg0: i32) -> (i32, i32) {
    %c0_i32 = arith.constant 0 : i32
    %c0_i32_0 = arith.constant 0 : i32
    %c0_i32_1 = arith.constant 0 : i32
    return %c0_i32, %c0_i32_0 : i32, i32
  }
  func.func @transform_2(%arg0: i32) -> (i32, i32) {
    %c0_i32 = arith.constant 0 : i32
    %c0_i32_0 = arith.constant 0 : i32
    return %arg0, %c0_i32 : i32, i32
  }
}

</mosaic_0001>

<llo_original>
// kernel: tpu_custom_call.1
$region0: #{tpu_custom_call.1}
  #allocation0 [shape = 'u32[]', space=smem, size = 0x4, offset = 0x4, fixed_abs, tag = 'smem constant byte address 0x4 - core index']
  #allocation1 [shape = 'u32[144,128]{1,0:T(1,128)}', space=vmem, size = 0x12000, scoped, tag = 'internal scratch']
  %s0 = inlined_call_operand.hbm [shape: bf16[8,16], index: 0, kind: input, shape index: {}]
  %s1 = inlined_call_operand.hbm [shape: bf16[288,128], index: 1, kind: input, shape index: {}]
  %s2 = inlined_call_operand.vmem [shape: f32[8,4], index: 2, kind: output, shape index: {}]
  %s3 = sld [smem:[#allocation0]]
  $region26: #{tpu_custom_call.1} parent=0
    _
  %s5 = ssub.s32 1, %s3
  %s6 = scalar_select 0, %s5, %s3
  $region1: #{tpu_custom_call.1} parent=0
    #allocation2 [shape = 'u8[2048]{0}', space=vmem, size = 0x800, scoped, tag = 'input window, operand 0, single buffered']
    #allocation3 [shape = 's32[1]{0}', space=sflag, size = 0x4, scoped, tag = 'scoped memory for tpu_custom_call.1']
    #allocation4 [shape = 'u8[73728]{0}', space=vmem, size = 0x12000, scoped, tag = 'input window, operand 1, single buffered']
    #allocation5 [shape = 's32[1]{0}', space=sflag, size = 0x4, scoped, tag = 'scoped memory for tpu_custom_call.1']
    %7 = vsyncpa [#allocation3], 0
    %8 = vsyncpa [#allocation5], 0
    // Predicated region
    $region2: #{tpu_custom_call.1} parent=1 // pred_check
      _
    $region3: #{tpu_custom_call.1} parent=1 // pred_check_branch
      %10 = sbr.rel (0) target = $region5
    $region4: #{tpu_custom_call.1} parent=1 // pred_region
      %s12 = ssub.s32 64, 64
      %13 = vsyncadd [#allocation3], %s12
      %s15 = sshll.u32 [#allocation2], 4
      %s16 = int_to_ptr.vmem [resolvable:$true] %s15
      %18 = dma.hbm_to_vmem [thread:$0]  %s0, 64, %s16, [#allocation3]
    $region5: #{tpu_custom_call.1} parent=1 // pred_fallthru
      _
    // Predicated region
    $region6: #{tpu_custom_call.1} parent=1 // pred_check
      _
    $region7: #{tpu_custom_call.1} parent=1 // pred_check_branch
      %20 = sbr.rel (0) target = $region9
    $region8: #{tpu_custom_call.1} parent=1 // pred_region
      %s22 = ssub.s32 2304, 2304
      %23 = vsyncadd [#allocation5], %s22
      %s24 = sshll.u32 [#allocation4], 4
      %s25 = int_to_ptr.vmem [resolvable:$true] %s24
      %30 = dma.hbm_to_vmem [thread:$0]  %s1, 2304, %s25, [#allocation5], 64, 64, 4
    $region9: #{tpu_custom_call.1} parent=1 // pred_fallthru
      _
    // Predicated region
    $region10: #{tpu_custom_call.1} parent=1 // pred_check
      _
    $region11: #{tpu_custom_call.1} parent=1 // pred_check_branch
      %32 = sbr.rel (0) target = $region13
    $region12: #{tpu_custom_call.1} parent=1 // pred_region
      %33 = dma.done [#allocation3], 64
    $region13: #{tpu_custom_call.1} parent=1 // pred_fallthru
      _
    // Predicated region
    $region14: #{tpu_custom_call.1} parent=1 // pred_check
      _
    $region15: #{tpu_custom_call.1} parent=1 // pred_check_branch
      %35 = sbr.rel (0) target = $region17
    $region16: #{tpu_custom_call.1} parent=1 // pred_region
      %36 = dma.done [#allocation5], 2304
    $region17: #{tpu_custom_call.1} parent=1 // pred_fallthru
      _
    %v38 = vld [vmem:[#allocation2] sm:$0xf]
    %v39 = vld [vmem:[#allocation4 + $0x88] sm:$0xf]
    %v40 = vunpack.c.l.bf16 %v39
    %v41 = vld [vmem:[#allocation4] sm:$0xf]
    %v42 = vld [vmem:[#allocation4 + $0x4] sm:$0xf]
    %v43 = vlaneseq
    %v44 = vshrl.u32 %v43, 7
    %v45 = vsub.s32 0, %v44
    %v46 = vrot.slane %v40, %v45
    %v49 = vunpack.c.l.b16 %v41
    %v50 = vunpack.c.l.b16 %v42
    %v51 = vpack.c.b16 %v50, %v49
    %vm53 = vcmask 130048
    %v55 = vsel %vm53, %v38, 0
    %57 = vmatprep.subr.bf16.mxu0 0
    %58 = vmatpush1.bf16.msra.mxu0 %v51
    %59 = vmatprep.subr.bf16.mxu0 0
    %60 = vmatpush1.bf16.msra.mxu0 0
    %61 = vmatprep.subr.bf16.mxu0 0
    %62 = vmatpush1.bf16.msra.mxu0 0
    %63 = vmatprep.subr.bf16.mxu0 0
    %64 = vmatpush1.bf16.msra.mxu0 0
    %65 = vmatprep.subr.bf16.mxu0 0
    %66 = vmatpush1.bf16.msra.mxu0 0
    %67 = vmatprep.subr.bf16.mxu0 0
    %68 = vmatpush1.bf16.msra.mxu0 0
    %69 = vmatprep.subr.bf16.mxu0 0
    %70 = vmatpush1.bf16.msra.mxu0 0
    %71 = vmatprep.subr.bf16.mxu0 0
    %72 = vmatpush1.bf16.msra.mxu0 0
    %73 = vmatprep.subr.bf16.mxu0 0
    %74 = vmatpush1.bf16.msra.mxu0 0
    %75 = vmatprep.subr.bf16.mxu0 0
    %76 = vmatpush1.bf16.msra.mxu0 0
    %77 = vmatprep.subr.bf16.mxu0 0
    %78 = vmatpush1.bf16.msra.mxu0 0
    %79 = vmatprep.subr.bf16.mxu0 0
    %80 = vmatpush1.bf16.msra.mxu0 0
    %81 = vmatprep.subr.bf16.mxu0 0
    %82 = vmatpush1.bf16.msra.mxu0 0
    %83 = vmatprep.subr.bf16.mxu0 0
    %84 = vmatpush1.bf16.msra.mxu0 0
    %85 = vmatprep.subr.bf16.mxu0 0
    %86 = vmatpush1.bf16.msra.mxu0 0
    %87 = vmatprep.subr.bf16.mxu0 0
    %88 = vmatpush1.bf16.msra.mxu0 0
    %89 = vmatprep.mubr.bf16.mxu0 0
    %90 = vmatmul.mubr.bf16.gmra.mrb[0].mxu0 %v55
    %v91 = vpop.f32.mrb[0].mxu0
    %v92 = vadd.f32 %v46, %v91
    %v93 = vpop.f32.mrb[0].mxu0
    %v94 = vpop.f32.mrb[0].mxu0
    %v95 = vpop.f32.mrb[0].mxu0
    %96 = vdwg.mxu0
    %v97 = vmax.f32 %v92, 0.0
    %v98 = vld [vmem:[#allocation4 + $0x8] sm:$0xf]
    %v99 = vld [vmem:[#allocation4 + $0xc] sm:$0xf]
    %v100 = vld [vmem:[#allocation4 + $0x10] sm:$0xf]
    %v101 = vld [vmem:[#allocation4 + $0x14] sm:$0xf]
    %v102 = vld [vmem:[#allocation4 + $0x18] sm:$0xf]
    %v103 = vld [vmem:[#allocation4 + $0x1c] sm:$0xf]
    %v104 = vld [vmem:[#allocation4 + $0x20] sm:$0xf]
    %v105 = vld [vmem:[#allocation4 + $0x24] sm:$0xf]
    %v106 = vld [vmem:[#allocation4 + $0x28] sm:$0xf]
    %v107 = vld [vmem:[#allocation4 + $0x2c] sm:$0xf]
    %v108 = vld [vmem:[#allocation4 + $0x30] sm:$0xf]
    %v109 = vld [vmem:[#allocation4 + $0x34] sm:$0xf]
    %v110 = vld [vmem:[#allocation4 + $0x38] sm:$0xf]
    %v111 = vld [vmem:[#allocation4 + $0x3c] sm:$0xf]
    %v112 = vld [vmem:[#allocation4 + $0x40] sm:$0xf]
    %v113 = vld [vmem:[#allocation4 + $0x44] sm:$0xf]
    %v114 = vpack.c.bf16 %v97, %v97
    %v115 = vlaneseq
    %v116 = vshrl.u32 %v115, 7
    %v117 = vsub.s32 1, %v116
    %v118 = vrot.slane %v40, %v117
    %v135 = vunpack.c.l.b16 %v98
    %v136 = vunpack.c.l.b16 %v99
    %v137 = vunpack.c.l.b16 %v100
    %v138 = vunpack.c.l.b16 %v101
    %v139 = vunpack.c.l.b16 %v102
    %v140 = vunpack.c.l.b16 %v103
    %v141 = vunpack.c.l.b16 %v104
    %v142 = vunpack.c.l.b16 %v105
    %v143 = vunpack.c.l.b16 %v106
    %v144 = vunpack.c.l.b16 %v107
    %v145 = vunpack.c.l.b16 %v108
    %v146 = vunpack.c.l.b16 %v109
    %v147 = vunpack.c.l.b16 %v110
    %v148 = vunpack.c.l.b16 %v111
    %v149 = vunpack.c.l.b16 %v112
    %v150 = vunpack.c.l.b16 %v113
    %v151 = vpack.c.b16 %v136, %v135
    %v152 = vpack.c.b16 %v138, %v137
    %v153 = vpack.c.b16 %v140, %v139
    %v154 = vpack.c.b16 %v142, %v141
    %v155 = vpack.c.b16 %v144, %v143
    %v156 = vpack.c.b16 %v146, %v145
    %v157 = vpack.c.b16 %v148, %v147
    %v158 = vpack.c.b16 %v150, %v149
    %167 = vmatprep.subr.bf16.mxu0 0
    %168 = vmatpush1.bf16.msra.mxu0 %v151
    %169 = vmatprep.subr.bf16.mxu0 0
    %170 = vmatpush1.bf16.msra.mxu0 %v152
    %171 = vmatprep.subr.bf16.mxu0 0
    %172 = vmatpush1.bf16.msra.mxu0 %v153
    %173 = vmatprep.subr.bf16.mxu0 0
    %174 = vmatpush1.bf16.msra.mxu0 %v154
    %175 = vmatprep.subr.bf16.mxu0 0
    %176 = vmatpush1.bf16.msra.mxu0 %v155
    %177 = vmatprep.subr.bf16.mxu0 0
    %178 = vmatpush1.bf16.msra.mxu0 %v156
    %179 = vmatprep.subr.bf16.mxu0 0
    %180 = vmatpush1.bf16.msra.mxu0 %v157
    %181 = vmatprep.subr.bf16.mxu0 0
    %182 = vmatpush1.bf16.msra.mxu0 %v158
    %183 = vmatprep.subr.bf16.mxu0 0
    %184 = vmatpush1.bf16.msra.mxu0 0
    %185 = vmatprep.subr.bf16.mxu0 0
    %186 = vmatpush1.bf16.msra.mxu0 0
    %187 = vmatprep.subr.bf16.mxu0 0
    %188 = vmatpush1.bf16.msra.mxu0 0
    %189 = vmatprep.subr.bf16.mxu0 0
    %190 = vmatpush1.bf16.msra.mxu0 0
    %191 = vmatprep.subr.bf16.mxu0 0
    %192 = vmatpush1.bf16.msra.mxu0 0
    %193 = vmatprep.subr.bf16.mxu0 0
    %194 = vmatpush1.bf16.msra.mxu0 0
    %195 = vmatprep.subr.bf16.mxu0 0
    %196 = vmatpush1.bf16.msra.mxu0 0
    %197 = vmatprep.subr.bf16.mxu0 0
    %198 = vmatpush1.bf16.msra.mxu0 0
    %199 = vmatprep.mubr.bf16.mxu0 0
    %200 = vmatmul.mubr.bf16.gmra.mrb[0].mxu0 %v114
    %v201 = vpop.f32.mrb[0].mxu0
    %v202 = vadd.f32 %v118, %v201
    %v203 = vpop.f32.mrb[0].mxu0
    %v204 = vpop.f32.mrb[0].mxu0
    %v205 = vpop.f32.mrb[0].mxu0
    %206 = vdwg.mxu0
    %v207 = vmax.f32 %v202, 0.0
    %v208 = vld [vmem:[#allocation4 + $0x48] sm:$0xf]
    %v209 = vld [vmem:[#allocation4 + $0x4c] sm:$0xf]
    %v210 = vld [vmem:[#allocation4 + $0x50] sm:$0xf]
    %v211 = vld [vmem:[#allocation4 + $0x54] sm:$0xf]
    %v212 = vld [vmem:[#allocation4 + $0x58] sm:$0xf]
    %v213 = vld [vmem:[#allocation4 + $0x5c] sm:$0xf]
    %v214 = vld [vmem:[#allocation4 + $0x60] sm:$0xf]
    %v215 = vld [vmem:[#allocation4 + $0x64] sm:$0xf]
    %v216 = vld [vmem:[#allocation4 + $0x68] sm:$0xf]
    %v217 = vld [vmem:[#allocation4 + $0x6c] sm:$0xf]
    %v218 = vld [vmem:[#allocation4 + $0x70] sm:$0xf]
    %v219 = vld [vmem:[#allocation4 + $0x74] sm:$0xf]
    %v220 = vld [vmem:[#allocation4 + $0x78] sm:$0xf]
    %v221 = vld [vmem:[#allocation4 + $0x7c] sm:$0xf]
    %v222 = vld [vmem:[#allocation4 + $0x80] sm:$0xf]
    %v223 = vld [vmem:[#allocation4 + $0x84] sm:$0xf]
    %v224 = vpack.c.bf16 %v207, %v207
    %v225 = vlaneseq
    %v226 = vshrl.u32 %v225, 7
    %v227 = vsub.s32 2, %v226
    %v228 = vrot.slane %v40, %v227
    %v245 = vunpack.c.l.b16 %v208
    %v246 = vunpack.c.l.b16 %v209
    %v247 = vunpack.c.l.b16 %v210
    %v248 = vunpack.c.l.b16 %v211
    %v249 = vunpack.c.l.b16 %v212
    %v250 = vunpack.c.l.b16 %v213
    %v251 = vunpack.c.l.b16 %v214
    %v252 = vunpack.c.l.b16 %v215
    %v253 = vunpack.c.l.b16 %v216
    %v254 = vunpack.c.l.b16 %v217
    %v255 = vunpack.c.l.b16 %v218
    %v256 = vunpack.c.l.b16 %v219
    %v257 = vunpack.c.l.b16 %v220
    %v258 = vunpack.c.l.b16 %v221
    %v259 = vunpack.c.l.b16 %v222
    %v260 = vunpack.c.l.b16 %v223
    %v261 = vpack.c.b16 %v246, %v245
    %v262 = vpack.c.b16 %v248, %v247
    %v263 = vpack.c.b16 %v250, %v249
    %v264 = vpack.c.b16 %v252, %v251
    %v265 = vpack.c.b16 %v254, %v253
    %v266 = vpack.c.b16 %v256, %v255
    %v267 = vpack.c.b16 %v258, %v257
    %v268 = vpack.c.b16 %v260, %v259
    %277 = vmatprep.subr.bf16.mxu0 0
    %278 = vmatpush1.bf16.msra.mxu0 %v261
    %279 = vmatprep.subr.bf16.mxu0 0
    %280 = vmatpush1.bf16.msra.mxu0 %v262
    %281 = vmatprep.subr.bf16.mxu0 0
    %282 = vmatpush1.bf16.msra.mxu0 %v263
    %283 = vmatprep.subr.bf16.mxu0 0
    %284 = vmatpush1.bf16.msra.mxu0 %v264
    %285 = vmatprep.subr.bf16.mxu0 0
    %286 = vmatpush1.bf16.msra.mxu0 %v265
    %287 = vmatprep.subr.bf16.mxu0 0
    %288 = vmatpush1.bf16.msra.mxu0 %v266
    %289 = vmatprep.subr.bf16.mxu0 0
    %290 = vmatpush1.bf16.msra.mxu0 %v267
    %291 = vmatprep.subr.bf16.mxu0 0
    %292 = vmatpush1.bf16.msra.mxu0 %v268
    %293 = vmatprep.subr.bf16.mxu0 0
    %294 = vmatpush1.bf16.msra.mxu0 0
    %295 = vmatprep.subr.bf16.mxu0 0
    %296 = vmatpush1.bf16.msra.mxu0 0
    %297 = vmatprep.subr.bf16.mxu0 0
    %298 = vmatpush1.bf16.msra.mxu0 0
    %299 = vmatprep.subr.bf16.mxu0 0
    %300 = vmatpush1.bf16.msra.mxu0 0
    %301 = vmatprep.subr.bf16.mxu0 0
    %302 = vmatpush1.bf16.msra.mxu0 0
    %303 = vmatprep.subr.bf16.mxu0 0
    %304 = vmatpush1.bf16.msra.mxu0 0
    %305 = vmatprep.subr.bf16.mxu0 0
    %306 = vmatpush1.bf16.msra.mxu0 0
    %307 = vmatprep.subr.bf16.mxu0 0
    %308 = vmatpush1.bf16.msra.mxu0 0
    %309 = vmatprep.mubr.bf16.mxu0 0
    %310 = vmatmul.mubr.bf16.gmra.mrb[0].mxu0 %v224
    %v311 = vpop.f32.mrb[0].mxu0
    %v312 = vadd.f32 %v228, %v311
    %v313 = vpop.f32.mrb[0].mxu0
    %v314 = vpop.f32.mrb[0].mxu0
    %v315 = vpop.f32.mrb[0].mxu0
    %316 = vdwg.mxu0
    %vm317 = vcmask 31744
    %318 = vst.msk [vmem:[%s2] sm:$0xff] %vm317, %v312
    // Predicated region
    $region18: #{tpu_custom_call.1} parent=1 // pred_check
      _
    $region19: #{tpu_custom_call.1} parent=1 // pred_check_branch
      %320 = sbr.rel (0) target = $region21
    $region20: #{tpu_custom_call.1} parent=1 // pred_region
      _
    $region21: #{tpu_custom_call.1} parent=1 // pred_fallthru
      _
    // Predicated region
    $region22: #{tpu_custom_call.1} parent=1 // pred_check
      _
    $region23: #{tpu_custom_call.1} parent=1 // pred_check_branch
      %322 = sbr.rel (0) target = $region25
    $region24: #{tpu_custom_call.1} parent=1 // pred_region
      _
    $region25: #{tpu_custom_call.1} parent=1 // pred_fallthru
      _
    %323 = vsyncpa [#allocation3], 1
    %324 = vsyncpa [#allocation5], 1

</llo_original>
